<compile_context>
chip_gen: v7x
topology: tpu7x:2x2x1
jax: 0.10.0
libtpu: 0.0.40
codegen_flags: <defaults>
</compile_context>

<pallas_src>
import jax
import jax.numpy as jnp
from jax.experimental import pallas as pl
from jax.experimental.pallas import tpu as pltpu

OMEGA_0 = 30.0
_LANES = 128
_TARGET_BLOCK_BYTES = 4 * 1024 * 1024  # ~4 MiB per block (per perf review)


def _round_up(x, m):
    return ((x + m - 1) // m) * m


def _incode_kernel(params_ref, x_ref, o_ref):
    # params_ref lives in SMEM: [exp(a), exp(b) * omega_0, c, d]
    scale0 = params_ref[0]
    scale1 = params_ref[1]
    c = params_ref[2]
    d = params_ref[3]
    x = x_ref[...].astype(jnp.float32)  # upcast in-register (free for f32)
    # TODO(synk): if bundle dumps confirm the VALU slot (not DMA) is binding on
    # v6e/v7x, replace jnp.sin with a tolerance-sized minimax polynomial
    # (f32 range reduction, bf16 polynomial) to roughly halve VALU work.
    y = scale0 * jnp.sin(scale1 * x + c) + d
    o_ref[...] = y.astype(o_ref.dtype)  # store in the original dtype


def _apply_jnp(x_flat, folded, out_dtype):
    """Plain-jnp fallback for the <128-element ragged tail."""
    xf = x_flat.astype(jnp.float32)
    y = folded[0] * jnp.sin(folded[1] * xf + folded[2]) + folded[3]
    return y.astype(out_dtype)


@jax.jit
def incode_activation(x, params):
    """params: float32 array of shape (4,) holding raw [a, b, c, d]."""
    orig_shape = x.shape
    orig_dtype = x.dtype
    itemsize = jnp.dtype(orig_dtype).itemsize

    # Fold the scalar exps once (tiny 4-element XLA op).
    a, b, c, d = params[0], params[1], params[2], params[3]
    folded = jnp.stack([jnp.exp(a), jnp.exp(b) * OMEGA_0, c, d]).astype(jnp.float32)

    flat = x.reshape(-1)
    n = flat.shape[0]
    if n == 0:
        return x

    rows = n // _LANES          # 128-aligned bulk rows handled by the kernel
    tail = n - rows * _LANES    # <128 leftover elements handled with jnp

    pieces = []
    if rows > 0:
        slab = flat[: rows * _LANES].reshape(rows, _LANES)  # lane-dense slab

        # Dtype-aware block sizing: ~4 MiB per block, block_rows a multiple of
        # the sublane packing factor, and at most ~rows/2 so the grid has >=2
        # steps for megacore sharding on v7x whenever the input allows it.
        sublane_mult = max(8, 32 // itemsize)   # f32: 8, bf16: 16, 8-bit: 32
        target_rows = max(sublane_mult, _TARGET_BLOCK_BYTES // (_LANES * itemsize))
        block_rows = max(
            sublane_mult,
            min(target_rows, _round_up(pl.cdiv(rows, 2), sublane_mult)),
        )
        grid = (pl.cdiv(rows, block_rows),)  # partial edge block masked by Pallas

        out_bulk = pl.pallas_call(
            _incode_kernel,
            out_shape=jax.ShapeDtypeStruct((rows, _LANES), orig_dtype),
            grid=grid,
            in_specs=[
                pl.BlockSpec(memory_space=pltpu.MemorySpace.SMEM),   # folded params
                pl.BlockSpec((block_rows, _LANES), lambda i: (i, 0)),  # input tile
            ],
            out_specs=pl.BlockSpec((block_rows, _LANES), lambda i: (i, 0)),
            compiler_params=pltpu.CompilerParams(
                dimension_semantics=("parallel",),
                # 2x(in + out) double buffers at 4 MiB blocks = 16 MiB;
                # 48 MiB gives headroom, stays under v7x's 64 MiB physical
                # VMEM, and overrides v5e's 16 MiB default scoped limit.
                vmem_limit_bytes=48 * 1024 * 1024,
            ),
        )(folded, slab)
        pieces.append(out_bulk.reshape(-1))

    if tail > 0:
        # Ragged tail (<128 elems): plain jnp instead of padding/slicing the
        # whole tensor, which would add full extra HBM round trips.
        pieces.append(_apply_jnp(flat[rows * _LANES:], folded, orig_dtype))

    out_flat = pieces[0] if len(pieces) == 1 else jnp.concatenate(pieces)
    return out_flat.reshape(orig_shape)


def incode_reference(x, params):
    a, b, c, d = params[0], params[1], params[2], params[3]
    xf = x.astype(jnp.float32)
    y = jnp.exp(a) * jnp.sin(jnp.exp(b) * OMEGA_0 * xf + c) + d
    return y.astype(x.dtype)


if __name__ == "__main__":
    # Deterministic parameter init matching the module defaults.
    params = jnp.array([0.1993, 0.0196, 0.0588, 0.0269], dtype=jnp.float32)

    # Primary test: f32 NCHW, lane-aligned flat size.
    x = jax.random.normal(jax.random.PRNGKey(0), (2, 4, 16, 16), dtype=jnp.float32)
    y = jax.block_until_ready(incode_activation(x, params))
    y_ref = incode_reference(x, params)
    assert y.shape == x.shape and y.dtype == x.dtype
    assert jnp.allclose(y, y_ref, atol=1e-4, rtol=1e-5), "f32 aligned mismatch"

    # Non-multiple-of-128 flat size: exercises the bulk-kernel + jnp-tail path.
    x2 = jax.random.normal(jax.random.PRNGKey(1), (1000, 3), dtype=jnp.float32)
    y2 = jax.block_until_ready(incode_activation(x2, params))
    assert jnp.allclose(y2, incode_reference(x2, params), atol=1e-4, rtol=1e-5), \
        "unaligned mismatch"

    # bf16 input: exercises dtype-aware block sizing and in-kernel upcast.
    x3 = jax.random.normal(jax.random.PRNGKey(2), (4, 64, 32), dtype=jnp.bfloat16)
    y3 = jax.block_until_ready(incode_activation(x3, params))
    assert y3.dtype == jnp.bfloat16 and y3.shape == x3.shape
    assert jnp.allclose(y3.astype(jnp.float32),
                        incode_reference(x3, params).astype(jnp.float32),
                        atol=2e-2, rtol=2e-2), "bf16 mismatch"

    print("KERNEL_OK")
</pallas_src>

<mosaic_0001>
module attributes {stable_mosaic.version = 11 : i64} {
  func.func @_incode_kernel(%arg0: i32, %arg1: memref<4xf32, #tpu.memory_space<smem>>, %arg2: memref<8x128xf32, #tpu.memory_space<vmem>>, %arg3: memref<8x128xf32, #tpu.memory_space<vmem>>) attributes {dimension_semantics = [#tpu.dimension_semantics<parallel>], iteration_bounds = array<i64: 2>, scalar_prefetch = 0 : i64, scratch_operands = 0 : i64, tpu.core_type = #tpu.core_type<tc>, window_params = [{transform_indices = @transform_0, window_bounds = array<i64: 4>}, {transform_indices = @transform_1, window_bounds = array<i64: 8, 128>}, {transform_indices = @transform_2, window_bounds = array<i64: 8, 128>}]} {
    %c0 = arith.constant 0 : index
    %0 = memref.load %arg1[%c0] : memref<4xf32, #tpu.memory_space<smem>>
    %c1 = arith.constant 1 : index
    %1 = memref.load %arg1[%c1] : memref<4xf32, #tpu.memory_space<smem>>
    %c2 = arith.constant 2 : index
    %2 = memref.load %arg1[%c2] : memref<4xf32, #tpu.memory_space<smem>>
    %c3 = arith.constant 3 : index
    %3 = memref.load %arg1[%c3] : memref<4xf32, #tpu.memory_space<smem>>
    %c0_0 = arith.constant 0 : index
    %c0_1 = arith.constant 0 : index
    %4 = vector.load %arg2[%c0_0, %c0_1] : memref<8x128xf32, #tpu.memory_space<vmem>>, vector<8x128xf32>
    %5 = vector.broadcast %1 : f32 to vector<8x128xf32>
    %6 = arith.mulf %5, %4 : vector<8x128xf32>
    %7 = vector.broadcast %2 : f32 to vector<8x128xf32>
    %8 = arith.addf %6, %7 : vector<8x128xf32>
    %9 = math.sin %8 : vector<8x128xf32>
    %10 = vector.broadcast %0 : f32 to vector<8x128xf32>
    %11 = arith.mulf %10, %9 : vector<8x128xf32>
    %12 = vector.broadcast %3 : f32 to vector<8x128xf32>
    %13 = arith.addf %11, %12 : vector<8x128xf32>
    %c0_2 = arith.constant 0 : index
    %c0_3 = arith.constant 0 : index
    %14 = vector.load %arg3[%c0_2, %c0_3] : memref<8x128xf32, #tpu.memory_space<vmem>>, vector<8x128xf32>
    tpu.vector_store %arg3[%c0_2, %c0_3], %13 {strides = array<i32>} : memref<8x128xf32, #tpu.memory_space<vmem>>, vector<8x128xf32>,
    return
  }
  func.func @transform_0(%arg0: i32) -> i32 {
    %c0_i32 = arith.constant 0 : i32
    %c0_i32_0 = arith.constant 0 : i32
    return %c0_i32 : i32
  }
  func.func @transform_1(%arg0: i32) -> (i32, i32) {
    %c0_i32 = arith.constant 0 : i32
    %c0_i32_0 = arith.constant 0 : i32
    return %arg0, %c0_i32 : i32, i32
  }
  func.func @transform_2(%arg0: i32) -> (i32, i32) {
    %c0_i32 = arith.constant 0 : i32
    %c0_i32_0 = arith.constant 0 : i32
    return %arg0, %c0_i32 : i32, i32
  }
}

</mosaic_0001>

<llo_original>
// kernel: incode_activation.1
$region0: #{incode_activation.1}
  #allocation0 [shape = 'u32[]', space=smem, size = 0x4, offset = 0x4, fixed_abs, tag = 'smem constant byte address 0x4 - core index']
  #allocation1 [shape = 'u32[144,128]{1,0:T(1,128)}', space=vmem, size = 0x12000, scoped, tag = 'internal scratch']
  %s0 = inlined_call_operand.vmem [shape: f32[4], index: 0, kind: input, shape index: {}]
  %s1 = inlined_call_operand.vmem [shape: f32[16,128], index: 1, kind: input, shape index: {}]
  %s2 = inlined_call_operand.vmem [shape: f32[16,128], index: 2, kind: output, shape index: {}]
  %s3 = sld [smem:[#allocation0]]
  $region45: #{incode_activation.1} parent=0
    _
  %s5 = ssub.s32 1, %s3
  %s6 = scalar_select 0, %s5, %s3
  $region1: #{incode_activation.1} parent=0
    #allocation2 [shape = 'u8[512]{0}', space=smem, size = 0x200, scoped, tag = 'input window, operand 0, single buffered']
    #allocation3 [shape = 's32[2]{0}', space=sflag, size = 0x8, scoped, tag = 'scoped memory for incode_activation.1']
    %7 = vsyncpa [#allocation3], 0
    loop: start=0, step=1, limit=4
    $region2: #{incode_activation.1} parent=1 // loop_pre_header
      _
    $region3: #{incode_activation.1} parent=1 // loop_header
      %s9 = sphi 0, %s13
      %p10 = scmp.ge.s32.totalorder %s9, 4
      %s17 = sphi 0, %s17
      %s19 = sphi 0, %s17
      %s20 = sphi 0, %s19
      %s34 = sphi 0, %s20
      %s40 = sphi 0, %s42
      %s43 = sphi 0, %s40
      %s44 = sphi 0, %s43
      %s60 = sphi 0, %s44
      %s66 = sphi 0, %s68
      %s69 = sphi 0, %s66
      %s70 = sphi 0, %s69
      %s86 = sphi 0, %s70
    $region4: #{incode_activation.1} parent=1 // loop_header_branch
      %12 = sbr.rel (%p10) target = $region8
    $region5: #{incode_activation.1} parent=1 // loop_body
      %s14 = ssub.s32 %s9, 1
      %s15 = ssub.s32 %s9, 2
      %s16 = sadd.s32 %s9, 1
      %s18 = sadd.s32 %s17, 1
      %p21 = scmp.eq.s32.totalorder %s9, 1
      %p22 = scmp.ne.s32.totalorder %s17, %s19
      %p23 = scmp.eq.s32.totalorder %s9, 0
      %p24 = por %p22, %p23
      %p25 = scmp.ne.s32.totalorder %s17, %s19
      %p26 = scmp.eq.s32.totalorder %s14, 1
      %p27 = por %p25, %p26
      %p28 = scmp.ne.s32.totalorder %s19, %s20
      %p29 = scmp.eq.s32.totalorder %s14, 0
      %p30 = por %p28, %p29
      %p31 = scmp.ne.s32.totalorder %s19, %s20
      %p32 = scmp.eq.s32.totalorder %s15, 1
      %p33 = por %p31, %p32
      %p35 = scmp.ne.s32.totalorder %s20, %s34
      %p36 = scmp.eq.s32.totalorder %s15, 0
      %p37 = por %p35, %p36
      %s38 = ssub.s32 %s9, %s16
      %p39 = scmp.eq.s32.totalorder %s38, 0
      %s41 = sadd.s32 %s40, 1
      %s42 = scalar_select %p39, %s40, %s41
      %p45 = pneg %p39
      %p46 = scmp.eq.s32.totalorder %s9, 1
      %p47 = por %p45, %p46
      %p48 = scmp.ne.s32.totalorder %s40, %s43
      %p49 = scmp.eq.s32.totalorder %s9, 0
      %p50 = por %p48, %p49
      %p51 = scmp.ne.s32.totalorder %s40, %s43
      %p52 = scmp.eq.s32.totalorder %s14, 1
      %p53 = por %p51, %p52
      %p54 = scmp.ne.s32.totalorder %s43, %s44
      %p55 = scmp.eq.s32.totalorder %s14, 0
      %p56 = por %p54, %p55
      %p57 = scmp.ne.s32.totalorder %s43, %s44
      %p58 = scmp.eq.s32.totalorder %s15, 1
      %p59 = por %p57, %p58
      %p61 = scmp.ne.s32.totalorder %s44, %s60
      %p62 = scmp.eq.s32.totalorder %s15, 0
      %p63 = por %p61, %p62
      %s64 = ssub.s32 %s9, %s16
      %p65 = scmp.eq.s32.totalorder %s64, 0
      %s67 = sadd.s32 %s66, 1
      %s68 = scalar_select %p65, %s66, %s67
      %p71 = pneg %p65
      %p72 = scmp.eq.s32.totalorder %s9, 1
      %p73 = por %p71, %p72
      %p74 = scmp.ne.s32.totalorder %s66, %s69
      %p75 = scmp.eq.s32.totalorder %s9, 0
      %p76 = por %p74, %p75
      %p77 = scmp.ne.s32.totalorder %s66, %s69
      %p78 = scmp.eq.s32.totalorder %s14, 1
      %p79 = por %p77, %p78
      %p80 = scmp.ne.s32.totalorder %s69, %s70
      %p81 = scmp.eq.s32.totalorder %s14, 0
      %p82 = por %p80, %p81
      %p83 = scmp.ne.s32.totalorder %s69, %s70
      %p84 = scmp.eq.s32.totalorder %s15, 1
      %p85 = por %p83, %p84
      %p87 = scmp.ne.s32.totalorder %s70, %s86
      %p88 = scmp.eq.s32.totalorder %s15, 0
      %p89 = por %p87, %p88
      %p90 = scmp.le.s32.totalorder 1, %s9
      %p91 = scmp.lt.s32.totalorder %s9, 3
      %p92 = pnand %p90, %p91
      %p93 = pneg %p92
      // Predicated region
      $region9: #{incode_activation.1} parent=5 // pred_check
        _
      $region10: #{incode_activation.1} parent=5 // pred_check_branch
        %95 = sbr.rel (%p92) target = $region12
      $region11: #{incode_activation.1} parent=5 // pred_region
        %s96 = ssub.s32 %s9, 1
        // Predicated region
        $region13: #{incode_activation.1} parent=11 // pred_check
          %p97 = pneg %p30
        $region14: #{incode_activation.1} parent=11 // pred_check_branch
          %99 = sbr.rel (%p97) target = $region16
        $region15: #{incode_activation.1} parent=11 // pred_region
          %s101 = ssub.s32 16, 16
          %102 = vsyncadd [#allocation3], %s101
          %s104 = sshll.u32 %s0, 4
          %s105 = int_to_ptr.vmem [resolvable:$true] %s104
          %107 = dma.vmem_to_smem %s105, 16, [#allocation2], [#allocation3]
        $region16: #{incode_activation.1} parent=11 // pred_fallthru
          _
      $region12: #{incode_activation.1} parent=5 // pred_fallthru
        _
      %p108 = scmp.lt.s32.totalorder %s9, 2
      // Predicated region
      $region17: #{incode_activation.1} parent=5 // pred_check
        %p109 = pneg %p108
      $region18: #{incode_activation.1} parent=5 // pred_check_branch
        %111 = sbr.rel (%p109) target = $region20
      $region19: #{incode_activation.1} parent=5 // pred_region
        // Predicated region
        $region21: #{incode_activation.1} parent=19 // pred_check
          %p112 = pneg %p50
        $region22: #{incode_activation.1} parent=19 // pred_check_branch
          %114 = sbr.rel (%p112) target = $region24
        $region23: #{incode_activation.1} parent=19 // pred_region
          %p115 = scmp.lt.s32.totalorder %s9, 1
          %s116 = scalar_select %p115, %s9, 1
          %s117 = smul.addr %s116, 8
          %s118 = scalar_lea.vmem %s1, %s117
        $region24: #{incode_activation.1} parent=19 // pred_fallthru
          _
      $region20: #{incode_activation.1} parent=5 // pred_fallthru
        _
      %p119 = scmp.le.s32.totalorder 1, %s9
      %p120 = scmp.lt.s32.totalorder %s9, 3
      %p121 = pnand %p119, %p120
      %p122 = pneg %p121
      // Predicated region
      $region25: #{incode_activation.1} parent=5 // pred_check
        _
      $region26: #{incode_activation.1} parent=5 // pred_check_branch
        %124 = sbr.rel (%p121) target = $region28
      $region27: #{incode_activation.1} parent=5 // pred_region
        %s125 = ssub.s32 %s9, 1
        // Predicated region
        $region29: #{incode_activation.1} parent=27 // pred_check
          %p126 = pneg %p30
        $region30: #{incode_activation.1} parent=27 // pred_check_branch
          %128 = sbr.rel (%p126) target = $region32
        $region31: #{incode_activation.1} parent=27 // pred_region
          %129 = dma.done [#allocation3], 16
        $region32: #{incode_activation.1} parent=27 // pred_fallthru
          _
        %130 = sfence
        %p131 = pneg %p30
        %p132 = pneg %p27
        %p133 = scmp.lt.s32.totalorder %s14, 1
        %s134 = scalar_select %p133, %s14, 1
        %s135 = smul.addr %s134, 8
        %s136 = scalar_lea.vmem %s1, %s135
        %p137 = pneg %p56
        %p138 = pneg %p53
        %p139 = pneg %p82
        %p140 = pneg %p79
        %p141 = scmp.lt.s32.totalorder %s14, 1
        %s142 = scalar_select %p141, %s14, 1
        %s143 = smul.addr %s142, 8
        %s144 = scalar_lea.vmem %s2, %s143
        %p145 = scmp.lt.s32.totalorder %s14, 1
        %s146 = scalar_select %p145, %s14, 1
        %s147 = smul.addr %s146, 8
        %s148 = scalar_lea.vmem %s1, %s147
        %p149 = scmp.lt.s32.totalorder %s14, 1
        %s150 = scalar_select %p149, %s14, 1
        %s151 = smul.addr %s150, 8
        %s152 = scalar_lea.vmem %s2, %s151
        %s153 = sld [smem:[#allocation2]]
        %s154 = sld [smem:[#allocation2 + $0x1]]
        %s155 = sld [smem:[#allocation2 + $0x2]]
        %s156 = sld [smem:[#allocation2 + $0x3]]
        %v157 = vld [vmem:[%s148] sm:$0xff]
        %v158 = vstv %s154
        %v159 = vmul.f32 %v158, %v157
        %v160 = vstv %s155
        %v161 = vadd.f32 %v159, %v160
        %v162 = vand.u32 2147483647, %v161
        %vm163 = vcmp.le.f32.partialorder %v162, 0.7853982
        %vm164 = vcmp.lt.s32.totalorder %v161, 0
        %v165 = vand.u32 %v161, 2139095040
        %v166 = vshrl.u32 %v165, 23
        %v167 = vsub.s32 %v166, 127
        %v168 = vand.u32 2147483647, %v161
        %v169 = vand.u32 %v168, 8388607
        %v170 = vor.u32 %v169, 8388608
        %v171 = vsub.s32 0, %v170
        %v172 = vadd.s32 %v167, 1
        %vm173 = vcmp.gt.s32.totalorder %v172, 0
        %v174 = vsel %vm173, %v172, 0
        %v175 = vshrl.u32 %v174, 5
        %v176 = vand.u32 %v174, 31
        %v177 = vsub.s32 32, %v176
        %v178 = vshrl.u32 683565275, %v177
        %v179 = vshll.u32 683565275, %v176
        %v180 = vshrl.u32 2475754826, %v177
        %v181 = vor.u32 %v179, %v180
        %v182 = vshll.u32 2475754826, %v176
        %v183 = vshrl.u32 2131351028, %v177
        %v184 = vor.u32 %v182, %v183
        %v185 = vshll.u32 2131351028, %v176
        %v186 = vshrl.u32 2102212464, %v177
        %v187 = vor.u32 %v185, %v186
        %v188 = vshll.u32 2102212464, %v176
        %v189 = vshrl.u32 920167782, %v177
        %v190 = vor.u32 %v188, %v189
        %v191 = vshll.u32 920167782, %v176
        %v192 = vshrl.u32 1326507024, %v177
        %v193 = vor.u32 %v191, %v192
        %vm194 = vcmp.lt.s32.totalorder %v175, 1
        %vm195 = vcmp.lt.s32.totalorder %v175, 2
        %vm196 = vcmp.lt.s32.totalorder %v175, 3
        %vm197 = vcmp.lt.s32.totalorder %v175, 4
        %v198 = vsel %vm194, %v178, %v181
        %v199 = vsel %vm197, %v187, 2102212464
        %v200 = vsel %vm196, %v184, %v199
        %v201 = vsel %vm195, %v198, %v200
        %v202 = vsel %vm194, %v181, %v184
        %v203 = vsel %vm197, %v190, 920167782
        %v204 = vsel %vm196, %v187, %v203
        %v205 = vsel %vm195, %v202, %v204
        %v206 = vsel %vm194, %v184, %v187
        %v207 = vsel %vm197, %v193, 1326507024
        %v208 = vsel %vm196, %v190, %v207
        %v209 = vsel %vm195, %v206, %v208
        %v210 = vshll.u32 %v170, 8
        %v211 = vmul.u32.u64.compose %v210, %v209
        %v212 = vextract.low.u32 %v211
        %v213 = vextract.high.u32 %v211
        %v214 = vmul.u32.u64.compose %v210, %v205
        %v215 = vextract.low.u32 %v214
        %v216 = vextract.high.u32 %v214
        %v217 = vmul.u32 %v210, %v201
        %v218 = vadd.s32 %v213, %v215
        %vm219 = vc.u32 %v213, %v215
        %v220 = vadd.s32 %v216, 1
        %v221 = vsel %vm219, %v220, %v216
        %v222 = vadd.s32 %v217, %v221
        %v223 = vadd.s32 %v222, 536870912
        %v224 = vshrl.u32 %v223, 30
        %v225 = vshll.u32 %v224, 30
        %v226 = vsub.s32 %v222, %v225
        %vm227 = vcmp.lt.s32.totalorder %v226, 0
        %v228 = vsub.s32 0, %v226
        %v229 = vsel %vm227, %v228, %v226
        %v230 = vclz %v229
        %v231 = vsub.s32 %v230, 2
        %vm232 = vcmp.gt.s32.totalorder 0, %v231
        %v233 = vsel %vm232, 0, %v231
        %v234 = vsub.s32 32, %v233
        %v235 = vshll.u32 %v226, %v233
        %v236 = vshrl.u32 %v218, %v234
        %v237 = vor.u32 %v235, %v236
        %v238 = vsub.s32 4294967266, %v233
        %v239 = vadd.s32 %v238, 127
        %v240 = vshll.u32 %v239, 23
        %v241 = vor.u32 4788187, %v240
        %v242 = vand.u32 2147483647, %v241
        %v244 = vcvt.s32.f32 %v237
        %v245 = vmul.f32 %v244, %v242
        %v246 = vxor.u32 %v245, 2147483648
        %v247 = vsel %vm164, %v246, %v245
        %v248 = vsub.s32 4, %v224
        %v249 = vsel %vm164, %v248, %v224
        %v250 = vsel %vm163, %v161, %v247
        %v251 = vsel %vm163, 0, %v249
        %v252 = vcosq.f32.pop %v250
        %v253 = vsinq.f32.pop %v250
        %vm254 = vweird.f32 %v161
        %v255 = vadd.s32 %v251, 3
        %v256 = vand.u32 %v255, 3
        %vm257 = vcmp.lt.s32.totalorder %v256, 2
        %vm258 = vcmp.eq.s32.totalorder %v256, 0
        %v259 = vxor.u32 %v253, 2147483648
        %v260 = vsel %vm258, %v252, %v259
        %vm261 = vcmp.eq.s32.totalorder %v256, 2
        %v262 = vxor.u32 %v252, 2147483648
        %v263 = vsel %vm261, %v262, %v253
        %v264 = vsel %vm257, %v260, %v263
        %v265 = vsel %vm254, nan, %v264
        %v266 = vstv %s153
        %v267 = vmul.f32 %v266, %v265
        %v268 = vstv %s156
        %v269 = vadd.f32 %v267, %v268
        %270 = vst [vmem:[%s152] sm:$0xff] %v269
        %p271 = scmp.lt.s32.totalorder %s14, 1
        %s272 = scalar_select %p271, %s14, 1
        %s273 = smul.addr %s272, 8
        %s274 = scalar_lea.vmem %s2, %s273
        // Predicated region
        $region33: #{incode_activation.1} parent=27 // pred_check
          %p275 = pneg %p79
        $region34: #{incode_activation.1} parent=27 // pred_check_branch
          %277 = sbr.rel (%p275) target = $region36
        $region35: #{incode_activation.1} parent=27 // pred_region
          _
        $region36: #{incode_activation.1} parent=27 // pred_fallthru
          _
      $region28: #{incode_activation.1} parent=5 // pred_fallthru
        _
      %p278 = scmp.le.s32.totalorder 2, %s9
      // Predicated region
      $region37: #{incode_activation.1} parent=5 // pred_check
        %p279 = pneg %p278
      $region38: #{incode_activation.1} parent=5 // pred_check_branch
        %281 = sbr.rel (%p279) target = $region40
      $region39: #{incode_activation.1} parent=5 // pred_region
        %s282 = ssub.s32 %s9, 2
        // Predicated region
        $region41: #{incode_activation.1} parent=39 // pred_check
          %p283 = pneg %p85
        $region42: #{incode_activation.1} parent=39 // pred_check_branch
          %285 = sbr.rel (%p283) target = $region44
        $region43: #{incode_activation.1} parent=39 // pred_region
          %p286 = scmp.lt.s32.totalorder %s15, 1
          %s287 = scalar_select %p286, %s15, 1
          %s288 = smul.addr %s287, 8
          %s289 = scalar_lea.vmem %s2, %s288
        $region44: #{incode_activation.1} parent=39 // pred_fallthru
          _
      $region40: #{incode_activation.1} parent=5 // pred_fallthru
        _
    $region6: #{incode_activation.1} parent=1 // loop_footer
      %s13 = sadd.s32 1, %s9
    $region7: #{incode_activation.1} parent=1 // loop_footer_branch
      %8 = sbr.rel target = $region3
    $region8: #{incode_activation.1} parent=1 // loop_exit
      _
    %290 = vsyncpa [#allocation3], 1
    %s291 = scalar_lea.sflag [#allocation3], 1
    %292 = vsyncpa %s291, 1

</llo_original>
